<compile_context>
chip_gen: v6e
topology: v6e:2x2x1
jax: 0.10.0
libtpu: 0.0.40
codegen_flags: <defaults>
</compile_context>

<pallas_src>
import functools

import jax
import jax.numpy as jnp
from jax.experimental import pallas as pl
from jax.experimental.pallas import tpu as pltpu


def _ce_row_kernel(logits_ref, target_ref, loss_ref, *, n_valid, tile_n):
    # logits_ref: (TILE_N, C) native dtype VMEM
    # target_ref: (TILE_N, 1) int32 VMEM
    # loss_ref:   (TILE_N, 1) f32 per-row -log p(target); padded rows -> 0
    x = logits_ref[...]                               # native dtype
    t = target_ref[...]                               # (TILE_N, 1) int32

    # Single iota, reused for the one-hot target select (no dynamic gather on TPU).
    col = jax.lax.broadcasted_iota(jnp.int32, x.shape, dimension=1)
    onehot = col == t                                 # (TILE_N, C) bool

    # Row max on the native dtype; upcast to f32 only for the exp/log path.
    m = jnp.max(x, axis=-1, keepdims=True)            # (TILE_N, 1)

    xf = x.astype(jnp.float32)
    mf = m.astype(jnp.float32)
    e = jnp.exp(xf - mf)                              # EUP
    sum_exp = jnp.sum(e, axis=-1, keepdims=True)      # (TILE_N, 1)
    tgt_logit = jnp.sum(jnp.where(onehot, xf, 0.0), axis=-1, keepdims=True)

    per_row = jnp.log(sum_exp) + mf - tgt_logit       # -log softmax[target]

    # Mask rows beyond the true batch size (host pads N up to a tile multiple).
    row = (pl.program_id(0) * tile_n
           + jax.lax.broadcasted_iota(jnp.int32, per_row.shape, dimension=0))
    loss_ref[...] = jnp.where(row < n_valid, per_row, 0.0)


def _round_up(x, m):
    return (x + m - 1) // m * m


def cross_entropy_loss(logits, targets, *, max_tile_n=1024,
                       vmem_budget_bytes=24 << 20):
    """logits: (N, C) float, targets: (N,) int -> scalar f32 (mean CE)."""
    n, c = logits.shape
    itemsize = jnp.dtype(logits.dtype).itemsize

    # Row tile sized so double-buffered native tiles + f32 working set fit a
    # conservative VMEM budget on every generation (incl. v7x's 64 MiB).
    per_row_bytes = c * (2 * itemsize + 3 * 4)        # 2x native (dbl-buf) + ~3x f32 temps
    tile_n = max(8, min(max_tile_n, vmem_budget_bytes // max(per_row_bytes, 1)))
    tile_n = max(8, (tile_n // 8) * 8)                # sublane multiple
    tile_n = int(min(tile_n, _round_up(n, 8)))

    n_pad = _round_up(n, tile_n)
    num_tiles = n_pad // tile_n

    if n_pad != n:
        logits = jnp.pad(logits, ((0, n_pad - n), (0, 0)))
        targets = jnp.pad(targets, (0, n_pad - n))
    targets2d = targets.astype(jnp.int32).reshape(n_pad, 1)

    kernel = functools.partial(_ce_row_kernel, n_valid=n, tile_n=tile_n)

    per_row = pl.pallas_call(
        kernel,
        out_shape=jax.ShapeDtypeStruct((n_pad, 1), jnp.float32),
        grid_spec=pltpu.PrefetchScalarGridSpec(
            num_scalar_prefetch=0,
            grid=(num_tiles,),
            in_specs=[
                pl.BlockSpec((tile_n, c), lambda i: (i, 0)),
                pl.BlockSpec((tile_n, 1), lambda i: (i, 0)),
            ],
            out_specs=pl.BlockSpec((tile_n, 1), lambda i: (i, 0)),
        ),
        compiler_params=pltpu.CompilerParams(
            dimension_semantics=("parallel",),        # independent row tiles (megacore on v7x)
            vmem_limit_bytes=48 * 1024 * 1024,
        ),
    )(logits, targets2d)

    # Tiny final reduction in plain JAX (padded rows already zeroed in-kernel).
    return jnp.sum(per_row) / jnp.float32(n)


def _reference(logits, targets):
    logp = jax.nn.log_softmax(logits, axis=-1)
    return -jnp.mean(jnp.take_along_axis(logp, targets[:, None], axis=-1))


if __name__ == "__main__":
    key = jax.random.PRNGKey(0)
    k1, k2, k3, k4 = jax.random.split(key, 4)

    # Test 1: small, tile-aligned batch.
    N, C = 8, 32
    logits = jax.random.normal(k1, (N, C), dtype=jnp.float32)
    targets = jax.random.randint(k2, (N,), 0, C, dtype=jnp.int32)
    loss = cross_entropy_loss(logits, targets)
    jax.block_until_ready(loss)
    ref = _reference(logits, targets)
    assert jnp.allclose(loss, ref, atol=1e-5, rtol=1e-5), (loss, ref)

    # Test 2: non-tile-aligned batch, forced multi-tile grid (exercises padding
    # mask + the parallel grid axis with num_tiles > 1).
    N2, C2 = 13, 40
    logits2 = jax.random.normal(k3, (N2, C2), dtype=jnp.float32)
    targets2 = jax.random.randint(k4, (N2,), 0, C2, dtype=jnp.int32)
    loss2 = cross_entropy_loss(logits2, targets2, max_tile_n=8)
    jax.block_until_ready(loss2)
    ref2 = _reference(logits2, targets2)
    assert jnp.allclose(loss2, ref2, atol=1e-5, rtol=1e-5), (loss2, ref2)

    print("KERNEL_OK")
</pallas_src>

<mosaic_0001>
module attributes {stable_mosaic.version = 11 : i64} {
  func.func @_ce_row_kernel(%arg0: i32, %arg1: memref<8x32xf32, #tpu.memory_space<vmem>>, %arg2: memref<8x1xi32, #tpu.memory_space<vmem>>, %arg3: memref<8x1xf32, #tpu.memory_space<vmem>>) attributes {dimension_semantics = [#tpu.dimension_semantics<parallel>], iteration_bounds = array<i64: 1>, scalar_prefetch = 0 : i64, scratch_operands = 0 : i64, tpu.core_type = #tpu.core_type<tc>, window_params = [{transform_indices = @transform_0, window_bounds = array<i64: 8, 32>}, {transform_indices = @transform_1, window_bounds = array<i64: 8, 1>}, {transform_indices = @transform_2, window_bounds = array<i64: 8, 1>}]} {
    %c0 = arith.constant 0 : index
    %c0_0 = arith.constant 0 : index
    %0 = vector.load %arg1[%c0, %c0_0] : memref<8x32xf32, #tpu.memory_space<vmem>>, vector<8x32xf32>
    %c0_1 = arith.constant 0 : index
    %c0_2 = arith.constant 0 : index
    %1 = vector.load %arg2[%c0_1, %c0_2] : memref<8x1xi32, #tpu.memory_space<vmem>>, vector<8x1xi32>
    %2 = tpu.iota {dimensions = array<i32: 1>} : vector<8x32xi32>
    %3 = vector.broadcast %1 : vector<8x1xi32> to vector<8x32xi32>
    %4 = arith.cmpi eq, %2, %3 : vector<8x32xi32>
    %cst = arith.constant dense<0xFF800000> : vector<8xf32>
    %5 = vector.multi_reduction <maximumf>, %0, %cst [1] : vector<8x32xf32> to vector<8xf32>
    %6 = vector.shape_cast %5 : vector<8xf32> to vector<8x1xf32>
    %7 = vector.broadcast %6 : vector<8x1xf32> to vector<8x32xf32>
    %8 = arith.subf %0, %7 : vector<8x32xf32>
    %9 = math.exp %8 : vector<8x32xf32>
    %cst_3 = arith.constant dense<0.000000e+00> : vector<8xf32>
    %10 = vector.multi_reduction <add>, %9, %cst_3 [1] : vector<8x32xf32> to vector<8xf32>
    %11 = vector.shape_cast %10 : vector<8xf32> to vector<8x1xf32>
    %cst_4 = arith.constant 0.000000e+00 : f32
    %12 = vector.broadcast %cst_4 : f32 to vector<8x32xf32>
    %13 = arith.select %4, %0, %12 : vector<8x32xi1>, vector<8x32xf32>
    %cst_5 = arith.constant dense<0.000000e+00> : vector<8xf32>
    %14 = vector.multi_reduction <add>, %13, %cst_5 [1] : vector<8x32xf32> to vector<8xf32>
    %15 = vector.shape_cast %14 : vector<8xf32> to vector<8x1xf32>
    %16 = math.log %11 : vector<8x1xf32>
    %17 = arith.addf %16, %6 : vector<8x1xf32>
    %18 = arith.subf %17, %15 : vector<8x1xf32>
    %c8_i32 = arith.constant 8 : i32
    %19 = arith.muli %arg0, %c8_i32 : i32
    %20 = tpu.iota {dimensions = array<i32: 0>} : vector<8x1xi32>
    %21 = vector.broadcast %19 : i32 to vector<8x1xi32>
    %22 = arith.addi %21, %20 : vector<8x1xi32>
    %c8_i32_6 = arith.constant 8 : i32
    %23 = vector.broadcast %c8_i32_6 : i32 to vector<8x1xi32>
    %24 = arith.cmpi slt, %22, %23 : vector<8x1xi32>
    %cst_7 = arith.constant 0.000000e+00 : f32
    %25 = vector.broadcast %cst_7 : f32 to vector<8x1xf32>
    %26 = arith.select %24, %18, %25 : vector<8x1xi1>, vector<8x1xf32>
    %c0_8 = arith.constant 0 : index
    %c0_9 = arith.constant 0 : index
    %27 = vector.load %arg3[%c0_8, %c0_9] : memref<8x1xf32, #tpu.memory_space<vmem>>, vector<8x1xf32>
    tpu.vector_store %arg3[%c0_8, %c0_9], %26 {strides = array<i32>} : memref<8x1xf32, #tpu.memory_space<vmem>>, vector<8x1xf32>,
    return
  }
  func.func @transform_0(%arg0: i32) -> (i32, i32) {
    %c0_i32 = arith.constant 0 : i32
    %c0_i32_0 = arith.constant 0 : i32
    return %arg0, %c0_i32 : i32, i32
  }
  func.func @transform_1(%arg0: i32) -> (i32, i32) {
    %c0_i32 = arith.constant 0 : i32
    %c0_i32_0 = arith.constant 0 : i32
    return %arg0, %c0_i32 : i32, i32
  }
  func.func @transform_2(%arg0: i32) -> (i32, i32) {
    %c0_i32 = arith.constant 0 : i32
    %c0_i32_0 = arith.constant 0 : i32
    return %arg0, %c0_i32 : i32, i32
  }
}

</mosaic_0001>

<llo_original>
// kernel: tpu_custom_call.1
$region0: #{tpu_custom_call.1}
  #allocation0 [shape = 'u32[]', space=smem, size = 0x4, offset = 0x4, fixed_abs, tag = 'smem constant byte address 0x4 - core index']
  #allocation1 [shape = 'u32[144,128]{1,0:T(1,128)}', space=vmem, size = 0x12000, scoped, tag = 'internal scratch']
  %s0 = inlined_call_operand.vmem [shape: f32[8,32], index: 0, kind: input, shape index: {}]
  %s1 = inlined_call_operand.vmem [shape: s32[8,1], index: 1, kind: input, shape index: {}]
  %s2 = inlined_call_operand.vmem [shape: f32[8,1], index: 2, kind: output, shape index: {}]
  %s3 = sld [smem:[#allocation0]]
  $region18: #{tpu_custom_call.1} parent=0
    _
  %s5 = ssub.s32 1, %s3
  %s6 = scalar_select 0, %s5, %s3
  // Predicated region
  $region2: #{tpu_custom_call.1} parent=0 // pred_check
    _
  $region3: #{tpu_custom_call.1} parent=0 // pred_check_branch
    %8 = sbr.rel (0) target = $region5
  $region4: #{tpu_custom_call.1} parent=0 // pred_region
    _
  $region5: #{tpu_custom_call.1} parent=0 // pred_fallthru
    _
  // Predicated region
  $region6: #{tpu_custom_call.1} parent=0 // pred_check
    _
  $region7: #{tpu_custom_call.1} parent=0 // pred_check_branch
    %10 = sbr.rel (0) target = $region9
  $region8: #{tpu_custom_call.1} parent=0 // pred_region
    _
  $region9: #{tpu_custom_call.1} parent=0 // pred_fallthru
    _
  %v11 = vld [vmem:[%s0] sm:$0xff]
  %v12 = vld [vmem:[%s1] sm:$0xff]
  %v13 = vlaneseq
  %v14 = vand.u32 %v13, 127
  %15 = vset.pattern.permute.xlu0 0
  %16 = vperm.xlu0 %15, %v12
  %v17 = vpop.permute.xlu0 %16
  %vm18 = vcmp.eq.s32.totalorder %v14, %v17
  %vm19 = vcmask 261120
  %v20 = vsel %vm19, %v11, -inf
  %21 = vmax.xlane.f32.xlu0 %v20
  %v22 = vpop.xlane.xlu0 %21
  %v23 = vsub.f32 %v11, %v22
  %v24 = vmul.f32 %v23, 1.442695
  %v25 = vpow.pop %v24
  %v26 = vsel %vm19, %v25, 0.0
  %27 = vadd.xlane.f32.xlu0 %v26
  %v28 = vpop.xlane.xlu0 %27
  %v29 = vsel %vm18, %v11, 0.0
  %v30 = vsel %vm19, %v29, 0.0
  %31 = vadd.xlane.f32.xlu0 %v30
  %v32 = vpop.xlane.xlu0 %31
  %v33 = vlog2.pop %v28
  %v34 = vmul.f32 %v33, 0.6931472
  %v35 = vadd.f32 %v34, %v22
  %v36 = vsub.f32 %v35, %v32
  %s37 = smul.u32 0, 8
  %v38 = vlaneseq
  %v39 = vshrl.u32 %v38, 7
  %v40 = vstv %s37
  %v41 = vadd.s32 %v40, %v39
  %vm42 = vcmp.lt.s32.totalorder %v41, 8
  %v43 = vsel %vm42, %v36, 0.0
  %vm44 = vcmask 7168
  %45 = vst.msk [vmem:[%s2] sm:$0xff] %vm44, %v43
  // Predicated region
  $region10: #{tpu_custom_call.1} parent=0 // pred_check
    _
  $region11: #{tpu_custom_call.1} parent=0 // pred_check_branch
    %47 = sbr.rel (0) target = $region13
  $region12: #{tpu_custom_call.1} parent=0 // pred_region
    _
  $region13: #{tpu_custom_call.1} parent=0 // pred_fallthru
    _
  // Predicated region
  $region14: #{tpu_custom_call.1} parent=0 // pred_check
    _
  $region15: #{tpu_custom_call.1} parent=0 // pred_check_branch
    %49 = sbr.rel (0) target = $region17
  $region16: #{tpu_custom_call.1} parent=0 // pred_region
    _
  $region17: #{tpu_custom_call.1} parent=0 // pred_fallthru
    _

</llo_original>
